<compile_context>
chip_gen: v7x
topology: tpu7x:2x2x1
jax: 0.10.0
libtpu: 0.0.40
codegen_flags: <defaults>
</compile_context>

<pallas_src>
import functools

import jax
import jax.numpy as jnp
from jax.experimental import pallas as pl
from jax.experimental.pallas import tpu as pltpu

_LANES = 128
_SUBLANES = 8
_SMALL_ELEMS = 256 * 1024     # <= this many elements: single-block fast path (1 MiB f32/input)
_BLOCK_ROWS = 4096            # grid block = (4096, 128) f32 = 2 MiB (multiple of 16 for bf16)


def _cdiv(a, b):
    return -(-a // b)


def _num_parallel_chunks():
    """2-way grid split only pays off on dual-TensorCore chips (v7x)."""
    try:
        kind = jax.devices()[0].device_kind.lower()
    except Exception:
        return 1
    return 2 if ("v7" in kind or "7x" in kind) else 1


def _bpr_small_kernel(pos_ref, neg_ref, out_ref, *, gamma, n, masked):
    """Single-block path: whole (rows, 128) slab resident in VMEM.

    `masked` is a static Python bool: the iota/compare/select tail mask is only
    emitted when the slab actually has padded lanes.  Output is a (1,1) SMEM
    scalar (no masked partial vst).
    """
    pos = pos_ref[...].astype(jnp.float32)
    neg = neg_ref[...].astype(jnp.float32)
    loss = -jnp.log(gamma + jax.nn.sigmoid(pos - neg))   # VPU + EUP only
    if masked:
        rows, lanes = loss.shape
        row = jax.lax.broadcasted_iota(jnp.int32, (rows, lanes), 0)
        lane = jax.lax.broadcasted_iota(jnp.int32, (rows, lanes), 1)
        loss = jnp.where(row * lanes + lane < n, loss, 0.0)   # select, not multiply
    out_ref[0, 0] = jnp.sum(loss) * (1.0 / n)


def _bpr_grid_kernel(pos_ref, neg_ref, out_ref, acc_ref, *,
                     gamma, total_rows, block_rows, k_steps):
    """Tiled grid reduction over the (total_rows, 128) main slab.

    grid = (p_chunks, k_steps); axis 0 is "parallel" (v7x dual-TC), axis 1 is
    the "arbitrary" reduction axis.  acc_ref is a single-vreg (8, 128) VMEM
    accumulator: zeroed at k == 0, fed with reshape(-1, 8, 128).sum(0) every
    step (pure VPU adds), and copied to this chunk's (8, 128) output block at
    the last step (the cross-lane reduce of ~1 vreg/chunk happens in the
    wrapper).  Edge / clamped-duplicate blocks are masked on the global row
    index; the mask is a select so garbage lanes never propagate.
    """
    p = pl.program_id(0)
    k = pl.program_id(1)
    gb = p * k_steps + k                       # UNclamped global row-block index
    start_row = gb * block_rows

    @pl.when(k == 0)
    def _init():
        acc_ref[...] = jnp.zeros_like(acc_ref)

    pos = pos_ref[...].astype(jnp.float32)
    neg = neg_ref[...].astype(jnp.float32)
    loss = -jnp.log(gamma + jax.nn.sigmoid(pos - neg))   # VPU + EUP only

    # Full blocks: mask-free hot path.
    @pl.when(start_row + block_rows <= total_rows)
    def _acc_full():
        acc_ref[...] += loss.reshape(block_rows // _SUBLANES, _SUBLANES, _LANES).sum(axis=0)

    # Edge block / duplicated (clamped) blocks: mask on the global row index.
    @pl.when(start_row + block_rows > total_rows)
    def _acc_tail():
        row = jax.lax.broadcasted_iota(jnp.int32, (block_rows, _LANES), 0)
        masked = jnp.where(start_row + row < total_rows, loss, 0.0)
        acc_ref[...] += masked.reshape(block_rows // _SUBLANES, _SUBLANES, _LANES).sum(axis=0)

    # Finalize this chunk: one lane-dense (8, 128) unmasked store.
    @pl.when(k == k_steps - 1)
    def _finalize():
        out_ref[...] = acc_ref[...]


def bpr_loss(pos_score, neg_score, gamma=1e-10):
    """Pallas TPU implementation of BPRLoss.forward."""
    assert pos_score.shape == neg_score.shape and pos_score.ndim == 1
    n = int(pos_score.shape[0])
    gamma = float(gamma)

    if n <= _SMALL_ELEMS:
        # ---- non-gridded fast path --------------------------------------
        n_pad = _cdiv(n, _LANES) * _LANES
        masked = n_pad != n
        pos, neg = pos_score, neg_score
        if masked:                      # tiny arrays only: pad cost is negligible
            pos = jnp.pad(pos, (0, n_pad - n))
            neg = jnp.pad(neg, (0, n_pad - n))
        rows = n_pad // _LANES
        pos = pos.reshape(rows, _LANES)
        neg = neg.reshape(rows, _LANES)
        out = pl.pallas_call(
            functools.partial(_bpr_small_kernel, gamma=gamma, n=n, masked=masked),
            out_shape=jax.ShapeDtypeStruct((1, 1), jnp.float32),
            in_specs=[pl.BlockSpec((rows, _LANES), lambda: (0, 0)),
                      pl.BlockSpec((rows, _LANES), lambda: (0, 0))],
            out_specs=pl.BlockSpec(memory_space=pltpu.MemorySpace.SMEM),
        )(pos, neg)
        return out[0, 0]

    # ---- tiled, pipelined grid reduction (no wrapper pad) ----------------
    rows = n // _LANES
    n_main = rows * _LANES
    if n_main == n:
        # Pure bitcast reshape: zero extra HBM traffic.
        pos_main = pos_score.reshape(rows, _LANES)
        neg_main = neg_score.reshape(rows, _LANES)
    else:
        # TODO(synk): zero-copy for N % 128 != 0 needs manual 1-D HBM DMA.
        pos_main = pos_score[:n_main].reshape(rows, _LANES)
        neg_main = neg_score[:n_main].reshape(rows, _LANES)

    total_blocks = _cdiv(rows, _BLOCK_ROWS)
    p_chunks = min(_num_parallel_chunks(), total_blocks)
    k_steps = _cdiv(total_blocks, p_chunks)
    last_block = total_blocks - 1

    # Clamp duplicated blocks (from the p_chunks rounding) to the last real
    # block; they contribute 0 via the in-kernel global-row mask.
    def in_map(p, k):
        return (jnp.minimum(p * k_steps + k, last_block), 0)

    partials = pl.pallas_call(
        functools.partial(_bpr_grid_kernel, gamma=gamma, total_rows=rows,
                          block_rows=_BLOCK_ROWS, k_steps=k_steps),
        out_shape=jax.ShapeDtypeStruct((p_chunks * _SUBLANES, _LANES), jnp.float32),
        grid_spec=pltpu.PrefetchScalarGridSpec(
            num_scalar_prefetch=0,
            grid=(p_chunks, k_steps),
            in_specs=[pl.BlockSpec((_BLOCK_ROWS, _LANES), in_map),
                      pl.BlockSpec((_BLOCK_ROWS, _LANES), in_map)],
            out_specs=pl.BlockSpec((_SUBLANES, _LANES), lambda p, k: (p, 0)),
            scratch_shapes=[pltpu.VMEM((_SUBLANES, _LANES), jnp.float32)],
        ),
        compiler_params=pltpu.CompilerParams(
            dimension_semantics=("parallel", "arbitrary"),
            vmem_limit_bytes=32 * 1024 * 1024,
        ),
    )(pos_main, neg_main)

    total = jnp.sum(partials)
    if n_main != n:
        # <128-element remainder: trivial jnp epilogue.
        tp = pos_score[n_main:].astype(jnp.float32)
        tn = neg_score[n_main:].astype(jnp.float32)
        total = total + jnp.sum(-jnp.log(gamma + jax.nn.sigmoid(tp - tn)))
    return total * (1.0 / n)


if __name__ == "__main__":
    key = jax.random.PRNGKey(0)
    k1, k2, k3, k4 = jax.random.split(key, 4)

    def ref_loss(p, q, gamma=1e-10):
        return -jnp.mean(jnp.log(gamma + jax.nn.sigmoid(p - q)))

    # Small-shape check (fast path, padded-tail mask), (N,) score vectors.
    N = 8
    pos_score = jax.random.normal(k1, (N,), dtype=jnp.float32)
    neg_score = jax.random.normal(k2, (N,), dtype=jnp.float32)
    loss = bpr_loss(pos_score, neg_score)
    jax.block_until_ready(loss)
    ref = ref_loss(pos_score, neg_score)
    assert jnp.allclose(loss, ref, atol=1e-6, rtol=1e-6), (loss, ref)

    # Aligned small path (no mask emitted, SMEM scalar output).
    N2 = 4096
    pos2 = jax.random.normal(k3, (N2,), dtype=jnp.float32)
    neg2 = jax.random.normal(k4, (N2,), dtype=jnp.float32)
    loss2 = bpr_loss(pos2, neg2)
    jax.block_until_ready(loss2)
    ref2 = ref_loss(pos2, neg2)
    assert jnp.allclose(loss2, ref2, atol=1e-6, rtol=1e-6), (loss2, ref2)

    # Grid path: one full + one partial (4096, 128) block, <128-element jnp
    # tail, and (on v7x) the 2-way parallel chunk split with clamped index_map.
    N3 = 786_482
    pos3 = jax.random.normal(k1, (N3,), dtype=jnp.float32)
    neg3 = jax.random.normal(k2, (N3,), dtype=jnp.float32)
    loss3 = bpr_loss(pos3, neg3)
    jax.block_until_ready(loss3)
    ref3 = ref_loss(pos3, neg3)
    assert jnp.allclose(loss3, ref3, atol=1e-4, rtol=1e-4), (loss3, ref3)

    print("KERNEL_OK")
</pallas_src>

<mosaic_0001>
module attributes {stable_mosaic.version = 11 : i64} {
  func.func @_bpr_small_kernel(%arg0: memref<1x128xf32, #tpu.memory_space<vmem>>, %arg1: memref<1x128xf32, #tpu.memory_space<vmem>>, %arg2: memref<1x1xf32, #tpu.memory_space<smem>>) attributes {dimension_semantics = [], scalar_prefetch = 0 : i64, scratch_operands = 0 : i64, tpu.core_type = #tpu.core_type<tc>} {
    %c0 = arith.constant 0 : index
    %c0_0 = arith.constant 0 : index
    %0 = vector.load %arg0[%c0, %c0_0] : memref<1x128xf32, #tpu.memory_space<vmem>>, vector<1x128xf32>
    %c0_1 = arith.constant 0 : index
    %c0_2 = arith.constant 0 : index
    %1 = vector.load %arg1[%c0_1, %c0_2] : memref<1x128xf32, #tpu.memory_space<vmem>>, vector<1x128xf32>
    %2 = arith.subf %0, %1 : vector<1x128xf32>
    %3 = arith.negf %2 : vector<1x128xf32>
    %4 = math.exp %3 : vector<1x128xf32>
    %cst = arith.constant 1.000000e+00 : f32
    %5 = vector.broadcast %cst : f32 to vector<1x128xf32>
    %6 = arith.addf %5, %4 : vector<1x128xf32>
    %7 = arith.divf %5, %6 : vector<1x128xf32>
    %cst_3 = arith.constant 1.000000e-10 : f32
    %8 = vector.broadcast %cst_3 : f32 to vector<1x128xf32>
    %9 = arith.addf %8, %7 : vector<1x128xf32>
    %10 = math.log %9 : vector<1x128xf32>
    %cst_4 = arith.constant 0.000000e+00 : f32
    %11 = vector.broadcast %cst_4 : f32 to vector<1x128xf32>
    %12 = arith.subf %11, %10 : vector<1x128xf32>
    %13 = tpu.iota {dimensions = array<i32: 0>} : vector<1x128xi32>
    %14 = tpu.iota {dimensions = array<i32: 1>} : vector<1x128xi32>
    %c128_i32 = arith.constant 128 : i32
    %15 = vector.broadcast %c128_i32 : i32 to vector<1x128xi32>
    %16 = arith.muli %13, %15 : vector<1x128xi32>
    %17 = arith.addi %16, %14 : vector<1x128xi32>
    %c8_i32 = arith.constant 8 : i32
    %18 = vector.broadcast %c8_i32 : i32 to vector<1x128xi32>
    %19 = arith.cmpi slt, %17, %18 : vector<1x128xi32>
    %cst_5 = arith.constant 0.000000e+00 : f32
    %20 = vector.broadcast %cst_5 : f32 to vector<1x128xf32>
    %21 = arith.select %19, %12, %20 : vector<1x128xi1>, vector<1x128xf32>
    %22 = vector.shape_cast %21 : vector<1x128xf32> to vector<1x1x128xf32>
    %cst_6 = arith.constant dense<0.000000e+00> : vector<1xf32>
    %23 = vector.multi_reduction <add>, %22, %cst_6 [1, 2] : vector<1x1x128xf32> to vector<1xf32>
    %24 = vector.shape_cast %23 : vector<1xf32> to vector<1x1x1xf32>
    %25 = vector.extract %24[0, 0, 0] : f32 from vector<1x1x1xf32>
    %cst_7 = arith.constant 1.250000e-01 : f32
    %26 = arith.mulf %25, %cst_7 : f32
    %c0_8 = arith.constant 0 : index
    %c0_9 = arith.constant 0 : index
    %27 = memref.load %arg2[%c0_8, %c0_9] : memref<1x1xf32, #tpu.memory_space<smem>>
    memref.store %26, %arg2[%c0_8, %c0_9] : memref<1x1xf32, #tpu.memory_space<smem>>
    return
  }
}

</mosaic_0001>

<llo_original>
// kernel: tpu_custom_call.1
$region0: #{tpu_custom_call.1}
  #allocation0 [shape = 'u32[]', space=smem, size = 0x4, offset = 0x4, fixed_abs, tag = 'smem constant byte address 0x4 - core index']
  #allocation1 [shape = 'u32[144,128]{1,0:T(1,128)}', space=vmem, size = 0x12000, scoped, tag = 'internal scratch']
  %s0 = inlined_call_operand.hbm [shape: f32[1,128], index: 0, kind: input, shape index: {}]
  %s1 = inlined_call_operand.vmem [shape: f32[1,128], index: 1, kind: input, shape index: {}]
  %s2 = inlined_call_operand.hbm [shape: f32[1,1], index: 2, kind: output, shape index: {}]
  %s3 = sld [smem:[#allocation0]]
  $region22: #{tpu_custom_call.1} parent=0
    _
  %s5 = ssub.s32 1, %s3
  %s6 = scalar_select 0, %s5, %s3
  $region1: #{tpu_custom_call.1} parent=0
    #allocation2 [shape = 'u8[512]{0}', space=vmem, size = 0x400, scoped, tag = 'input window, operand 0, single buffered']
    #allocation3 [shape = 's32[1]{0}', space=sflag, size = 0x4, scoped, tag = 'scoped memory for tpu_custom_call.1']
    #allocation4 [shape = 's32[1]{0}', space=sflag, size = 0x4, scoped, tag = 'scoped memory for tpu_custom_call.1']
    #allocation5 [shape = 'u8[512]{0}', space=smem, size = 0x200, scoped, tag = 'output window, operand 0, single buffered']
    %7 = vsyncpa [#allocation3], 0
    %8 = vsyncpa [#allocation4], 0
    // Predicated region
    $region2: #{tpu_custom_call.1} parent=1 // pred_check
      _
    $region3: #{tpu_custom_call.1} parent=1 // pred_check_branch
      %10 = sbr.rel (0) target = $region5
    $region4: #{tpu_custom_call.1} parent=1 // pred_region
      %s12 = ssub.s32 16, 16
      %13 = vsyncadd [#allocation3], %s12
      %s15 = sshll.u32 [#allocation2], 4
      %s16 = int_to_ptr.vmem [resolvable:$true] %s15
      %18 = dma.hbm_to_vmem [thread:$0]  %s0, 16, %s16, [#allocation3]
    $region5: #{tpu_custom_call.1} parent=1 // pred_fallthru
      _
    // Predicated region
    $region6: #{tpu_custom_call.1} parent=1 // pred_check
      _
    $region7: #{tpu_custom_call.1} parent=1 // pred_check_branch
      %20 = sbr.rel (0) target = $region9
    $region8: #{tpu_custom_call.1} parent=1 // pred_region
      _
    $region9: #{tpu_custom_call.1} parent=1 // pred_fallthru
      _
    // Predicated region
    $region10: #{tpu_custom_call.1} parent=1 // pred_check
      _
    $region11: #{tpu_custom_call.1} parent=1 // pred_check_branch
      %22 = sbr.rel (0) target = $region13
    $region12: #{tpu_custom_call.1} parent=1 // pred_region
      %23 = dma.done [#allocation3], 16
    $region13: #{tpu_custom_call.1} parent=1 // pred_fallthru
      _
    %v24 = vld [vmem:[#allocation2] sm:$0x1]
    %v25 = vld [vmem:[%s1] sm:$0x1]
    %v26 = vsub.f32 %v24, %v25
    %v27 = vxor.u32 %v26, 2147483648
    %v28 = vmul.f32 %v27, 1.442695
    %v29 = vpow.pop %v28
    %v30 = vadd.f32 %v29, 1.0
    %v31 = vrcp.pop %v30
    %v32 = vmul.f32 1.0, %v31
    %v33 = vadd.f32 %v32, 1e-10
    %v34 = vlog2.pop %v33
    %v35 = vmul.f32 %v34, 0.6931472
    %v36 = vsub.f32 0.0, %v35
    %v37 = vlaneseq
    %v38 = vshrl.u32 %v37, 7
    %v39 = vlaneseq
    %v40 = vand.u32 %v39, 127
    %v41 = vmul.u32 %v38, 128
    %v42 = vadd.s32 %v41, %v40
    %vm43 = vcmp.lt.s32.totalorder %v42, 8
    %v44 = vsel %vm43, %v36, 0.0
    %vm45 = vcmask 1040384
    %v46 = vsel %vm45, %v44, 0.0
    %47 = vadd.xlane.f32.xlu0 %v46
    %v48 = vpop.xlane.xlu0 %47
    %v49 = vrot.slane %v48, 4
    %v50 = vadd.f32 %v48, %v49
    %v51 = vrot.slane %v50, 2
    %v52 = vadd.f32 %v50, %v51
    %v53 = vrot.slane %v52, 1
    %v54 = vadd.f32 %v52, %v53
    %s55 = vtos %v54
    %s56 = smul.f32 %s55, 0.125
    %s57 = scalar_lea.smem [#allocation5], 0
    %58 = sst [smem:[%s57]] %s56
    // Predicated region
    $region14: #{tpu_custom_call.1} parent=1 // pred_check
      _
    $region15: #{tpu_custom_call.1} parent=1 // pred_check_branch
      %60 = sbr.rel (0) target = $region17
    $region16: #{tpu_custom_call.1} parent=1 // pred_region
      %s62 = ssub.s32 16, 16
      %63 = vsyncadd [#allocation4], %s62
      %66 = dma.smem_to_hbm [#allocation5], 16, %s2, [#allocation4]
    $region17: #{tpu_custom_call.1} parent=1 // pred_fallthru
      _
    // Predicated region
    $region18: #{tpu_custom_call.1} parent=1 // pred_check
      _
    $region19: #{tpu_custom_call.1} parent=1 // pred_check_branch
      %68 = sbr.rel (0) target = $region21
    $region20: #{tpu_custom_call.1} parent=1 // pred_region
      %69 = dma.done [#allocation4], 16
    $region21: #{tpu_custom_call.1} parent=1 // pred_fallthru
      _
    %70 = sfence
    %71 = vsyncpa [#allocation3], 1
    %72 = vsyncpa [#allocation4], 1

</llo_original>
